<compile_context>
chip_gen: v5e
topology: v5e:2x2
jax: 0.10.0
libtpu: 0.0.40
codegen_flags: <defaults>
</compile_context>

<pallas_src>
import functools

import numpy as np
import jax
import jax.numpy as jnp
from jax import lax
from jax.experimental import pallas as pl
from jax.experimental.pallas import tpu as pltpu


def _wavelet1_kernel(w_img, w_A, w_VH, w_D, w_tD, alpha,
                     s1_ref, s2_ref, s3_ref, s4_ref,
                     h1_ref, h2_ref, h3_ref, h4_ref, out_ref):
    k = pl.program_id(1)

    @pl.when(k == 0)
    def _():
        out_ref[...] = jnp.zeros_like(out_ref)

    tile_rows = s1_ref.shape[0]
    ch = out_ref.shape[0]              # 8-row chunk == accumulator height
    n_chunks = tile_rows // ch

    def chunk_term(sl):
        x1 = s1_ref[sl, :].astype(jnp.float32)
        x2 = s2_ref[sl, :].astype(jnp.float32)
        x3 = s3_ref[sl, :].astype(jnp.float32)
        x4 = s4_ref[sl, :].astype(jnp.float32)
        y1 = h1_ref[sl, :].astype(jnp.float32)
        y2 = h2_ref[sl, :].astype(jnp.float32)
        y3 = h3_ref[sl, :].astype(jnp.float32)
        y4 = h4_ref[sl, :].astype(jnp.float32)

        # Full-resolution image MSE: the four quadrants partition the image.
        d1 = x1 - y1
        d2 = x2 - y2
        d3 = x3 - y3
        d4 = x4 - y4
        e_img = d1 * d1 + d2 * d2 + d3 * d3 + d4 * d4

        def haar(a1, a2, a3, a4):
            # Un-normalised butterfly (8 adds); the DWT 1/2 factor is folded
            # into the subband weights as 0.25.
            p12 = a1 + a2
            p34 = a3 + a4
            m21 = a2 - a1
            m43 = a4 - a3
            return p12 + p34, p34 - p12, m21 + m43, m43 - m21

        sll, shl, slh, shh = haar(x1, x2, x3, x4)
        hll, hhl, hlh, hhh = haar(y1, y2, y3, y4)

        dll = sll - hll
        dhl = shl - hhl
        dlh = slh - hlh
        dhh = shh - hhh

        t_hl = jnp.maximum(alpha * (hhl * hhl) - shl * shl, 0.0)
        t_lh = jnp.maximum(alpha * (hlh * hlh) - slh * slh, 0.0)
        t_hh = jnp.maximum(alpha * (hhh * hhh) - shh * shh, 0.0)

        e_A = dll * dll
        e_VH = dhl * dhl + dlh * dlh + t_hl + t_lh     # w_VH == w_tVH (shared)
        e_D = dhh * dhh

        return (w_img * e_img + w_A * e_A + w_VH * e_VH
                + w_D * e_D + w_tD * t_hh)

    if n_chunks == 1:
        out_ref[...] += chunk_term(pl.ds(0, ch))
    else:
        def body(c, carry):
            r0 = pl.multiple_of(c * ch, ch)
            out_ref[...] += chunk_term(pl.ds(r0, ch))
            return carry

        lax.fori_loop(0, n_chunks, body, 0, unroll=False)


def wavelet1_loss(sr, hr, *, lane_cap=512, max_tile_rows=256):
    """Pallas TPU implementation of Wavelet1.forward(sr, hr)."""
    assert sr.shape == hr.shape
    N, C, H, W = sr.shape
    if C != 1:
        # TODO(synk): the module slices the 4C-channel DWT stack with fixed
        # [0:1], [1:3], [3:] channel ranges, which only matches subbands for
        # C == 1; general C would need per-(subband, channel) weights.
        raise NotImplementedError("Wavelet1 Pallas kernel assumes C == 1")
    assert H % 2 == 0 and W % 2 == 0

    H2, W2 = H // 2, W // 2
    total = N * C * H * W
    quad_total = N * C * H2 * W2

    # Dense 2x2 quadrants (wrapper-side relayout; removes 4x-redundant
    # in-kernel subband math, lane rotations and masking).
    def quadrants(x):
        return (x[:, :, 0::2, 0::2], x[:, :, 1::2, 0::2],
                x[:, :, 0::2, 1::2], x[:, :, 1::2, 1::2])

    # Lane-dense flattening of each quadrant to (rows, lane), lane % 128 == 0.
    CH = 8                                     # row-chunk / accumulator height
    lane_cap = max(128, (lane_cap // 128) * 128)
    lane = lane_cap if quad_total >= lane_cap else 128 * pl.cdiv(quad_total, 128)
    rows = pl.cdiv(quad_total, lane)

    # Row tile: multiple of CH, byte-budgeted so the 8 double-buffered input
    # blocks (f32 worst case) stay far below the scoped VMEM limit.
    max_tile_rows = max(CH, (max_tile_rows // CH) * CH)
    tile_rows = min(max_tile_rows, CH * pl.cdiv(rows, CH))
    num_tiles = pl.cdiv(rows, tile_rows)
    if num_tiles >= 2 and num_tiles % 2 == 1:
        num_tiles += 1                         # even tile count -> both v7x TCs busy
    P = 2 if num_tiles >= 2 else 1
    K = num_tiles // P
    rows_pad = num_tiles * tile_rows

    def prep(q):
        flat = q.reshape(-1)
        pad = rows_pad * lane - quad_total
        if pad:
            flat = jnp.pad(flat, (0, pad))     # zero padding -> zero loss terms
        return flat.reshape(rows_pad, lane)

    inputs = [prep(q) for q in quadrants(sr)] + [prep(q) for q in quadrants(hr)]

    # Static per-term weights (C == 1); DWT 1/2 normalisation folded as 0.25.
    n_img = float(total)
    n_A = float(N * H2 * W2)
    n_VH = float(N * 2 * H2 * W2)
    n_D = float(N * H2 * W2)
    w_img = 0.1 / n_img
    w_A = 0.25 * 0.01 / n_A
    w_VH = 0.25 * 0.75 / n_VH                  # shared by loss_VH and loss_tVH
    w_D = 0.25 * 0.99 / n_D
    w_tD = 0.25 * 1.0 / n_D

    kernel = functools.partial(_wavelet1_kernel,
                               w_img, w_A, w_VH, w_D, w_tD, 1.2)

    in_spec = pl.BlockSpec((tile_rows, lane), lambda p, k: (p * K + k, 0))
    out_spec = pl.BlockSpec((CH, lane), lambda p, k: (p, 0))

    grid_spec = pltpu.PrefetchScalarGridSpec(
        num_scalar_prefetch=0,
        grid=(P, K),
        in_specs=[in_spec] * 8,
        out_specs=out_spec,
    )

    itemsize = jnp.dtype(sr.dtype).itemsize
    cost = pl.CostEstimate(
        flops=64 * quad_total,                 # ~60-65 VPU ops per quadrant elem
        transcendentals=0,
        bytes_accessed=8 * quad_total * itemsize + P * CH * lane * 4,
    )

    partials = pl.pallas_call(
        kernel,
        out_shape=jax.ShapeDtypeStruct((P * CH, lane), jnp.float32),
        grid_spec=grid_spec,
        compiler_params=pltpu.CompilerParams(
            dimension_semantics=("parallel", "arbitrary"),
            vmem_limit_bytes=32 * 1024 * 1024),
        cost_estimate=cost,
    )(*inputs)

    return jnp.sum(partials)


def _reference(sr, hr):
    """Pure-JAX mirror of the PyTorch module, used for a correctness check."""
    def dwt_init(x):
        x01 = x[:, :, 0::2, :] / 2
        x02 = x[:, :, 1::2, :] / 2
        x1 = x01[:, :, :, 0::2]
        x2 = x02[:, :, :, 0::2]
        x3 = x01[:, :, :, 1::2]
        x4 = x02[:, :, :, 1::2]
        return jnp.concatenate([x1 + x2 + x3 + x4,
                                -x1 - x2 + x3 + x4,
                                -x1 + x2 - x3 + x4,
                                x1 - x2 - x3 + x4], axis=1)

    def mse(a, b):
        return jnp.mean((a - b) ** 2)

    def tex(x, y, alpha=1.2):
        return jnp.mean(jnp.maximum(alpha * y * y - x * x, 0.0))

    hr_w = dwt_init(hr)
    sr_w = dwt_init(sr)
    loss_A = mse(sr_w[:, 0:1], hr_w[:, 0:1])
    loss_VH = mse(sr_w[:, 1:3], hr_w[:, 1:3])
    loss_D = mse(sr_w[:, 3:], hr_w[:, 3:])
    loss_tVH = tex(sr_w[:, 1:3], hr_w[:, 1:3])
    loss_tD = tex(sr_w[:, 3:], hr_w[:, 3:])
    loss_img = mse(sr, hr)
    return (loss_D * 0.99 + loss_VH * 0.75 + loss_A * 0.01
            + loss_img * 0.1 + loss_tVH * 0.75 + loss_tD * 1.0)


if __name__ == "__main__":
    key = jax.random.PRNGKey(0)

    # Wavelet1 is parameter-free; its channel slicing of the 4C-channel DWT
    # stack assumes single-channel images, so the demo uses C = 1.
    cases = [
        ((2, 1, 16, 16), {}),                                    # single-tile path
        ((2, 1, 64, 128), dict(lane_cap=128, max_tile_rows=8)),  # multi-tile / 2-chunk grid
    ]
    for idx, (shape, kwargs) in enumerate(cases):
        ka, kb = jax.random.split(jax.random.fold_in(key, idx))
        sr = jax.random.normal(ka, shape, dtype=jnp.float32)
        hr = jax.random.normal(kb, shape, dtype=jnp.float32)

        loss = jax.block_until_ready(wavelet1_loss(sr, hr, **kwargs))
        ref = jax.block_until_ready(_reference(sr, hr))
        assert np.allclose(np.asarray(loss), np.asarray(ref),
                           rtol=1e-5, atol=1e-5), (shape, loss, ref)

    print("KERNEL_OK")
</pallas_src>

<mosaic_0001>
module attributes {stable_mosaic.version = 11 : i64} {
  func.func @_wavelet1_kernel(%arg0: i32, %arg1: i32, %arg2: memref<8x128xf32, #tpu.memory_space<vmem>>, %arg3: memref<8x128xf32, #tpu.memory_space<vmem>>, %arg4: memref<8x128xf32, #tpu.memory_space<vmem>>, %arg5: memref<8x128xf32, #tpu.memory_space<vmem>>, %arg6: memref<8x128xf32, #tpu.memory_space<vmem>>, %arg7: memref<8x128xf32, #tpu.memory_space<vmem>>, %arg8: memref<8x128xf32, #tpu.memory_space<vmem>>, %arg9: memref<8x128xf32, #tpu.memory_space<vmem>>, %arg10: memref<8x128xf32, #tpu.memory_space<vmem>>) attributes {dimension_semantics = [#tpu.dimension_semantics<parallel>, #tpu.dimension_semantics<arbitrary>], iteration_bounds = array<i64: 1, 1>, scalar_prefetch = 0 : i64, scratch_operands = 0 : i64, tpu.core_type = #tpu.core_type<tc>, window_params = [{transform_indices = @transform_0, window_bounds = array<i64: 8, 128>}, {transform_indices = @transform_1, window_bounds = array<i64: 8, 128>}, {transform_indices = @transform_2, window_bounds = array<i64: 8, 128>}, {transform_indices = @transform_3, window_bounds = array<i64: 8, 128>}, {transform_indices = @transform_4, window_bounds = array<i64: 8, 128>}, {transform_indices = @transform_5, window_bounds = array<i64: 8, 128>}, {transform_indices = @transform_6, window_bounds = array<i64: 8, 128>}, {transform_indices = @transform_7, window_bounds = array<i64: 8, 128>}, {transform_indices = @transform_8, window_bounds = array<i64: 8, 128>}]} {
    %c0_i32 = arith.constant 0 : i32
    %0 = arith.cmpi eq, %arg1, %c0_i32 : i32
    %1 = arith.extui %0 : i1 to i32
    %c0_i32_0 = arith.constant 0 : i32
    %2 = arith.cmpi ne, %1, %c0_i32_0 : i32
    scf.if %2 {
      %cst_30 = arith.constant 0.000000e+00 : f32
      %87 = vector.broadcast %cst_30 : f32 to vector<8x128xf32>
      %c0_31 = arith.constant 0 : index
      %c0_32 = arith.constant 0 : index
      %88 = vector.load %arg10[%c0_31, %c0_32] : memref<8x128xf32, #tpu.memory_space<vmem>>, vector<8x128xf32>
      tpu.vector_store %arg10[%c0_31, %c0_32], %87 {strides = array<i32>} : memref<8x128xf32, #tpu.memory_space<vmem>>, vector<8x128xf32>,
    } else {
    }
    %c0 = arith.constant 0 : index
    %c0_1 = arith.constant 0 : index
    %3 = vector.load %arg10[%c0, %c0_1] : memref<8x128xf32, #tpu.memory_space<vmem>>, vector<8x128xf32>
    %c0_2 = arith.constant 0 : index
    %c0_3 = arith.constant 0 : index
    %4 = vector.load %arg2[%c0_2, %c0_3] : memref<8x128xf32, #tpu.memory_space<vmem>>, vector<8x128xf32>
    %c0_4 = arith.constant 0 : index
    %c0_5 = arith.constant 0 : index
    %5 = vector.load %arg3[%c0_4, %c0_5] : memref<8x128xf32, #tpu.memory_space<vmem>>, vector<8x128xf32>
    %c0_6 = arith.constant 0 : index
    %c0_7 = arith.constant 0 : index
    %6 = vector.load %arg4[%c0_6, %c0_7] : memref<8x128xf32, #tpu.memory_space<vmem>>, vector<8x128xf32>
    %c0_8 = arith.constant 0 : index
    %c0_9 = arith.constant 0 : index
    %7 = vector.load %arg5[%c0_8, %c0_9] : memref<8x128xf32, #tpu.memory_space<vmem>>, vector<8x128xf32>
    %c0_10 = arith.constant 0 : index
    %c0_11 = arith.constant 0 : index
    %8 = vector.load %arg6[%c0_10, %c0_11] : memref<8x128xf32, #tpu.memory_space<vmem>>, vector<8x128xf32>
    %c0_12 = arith.constant 0 : index
    %c0_13 = arith.constant 0 : index
    %9 = vector.load %arg7[%c0_12, %c0_13] : memref<8x128xf32, #tpu.memory_space<vmem>>, vector<8x128xf32>
    %c0_14 = arith.constant 0 : index
    %c0_15 = arith.constant 0 : index
    %10 = vector.load %arg8[%c0_14, %c0_15] : memref<8x128xf32, #tpu.memory_space<vmem>>, vector<8x128xf32>
    %c0_16 = arith.constant 0 : index
    %c0_17 = arith.constant 0 : index
    %11 = vector.load %arg9[%c0_16, %c0_17] : memref<8x128xf32, #tpu.memory_space<vmem>>, vector<8x128xf32>
    %12 = arith.subf %4, %8 : vector<8x128xf32>
    %13 = arith.subf %5, %9 : vector<8x128xf32>
    %14 = arith.subf %6, %10 : vector<8x128xf32>
    %15 = arith.subf %7, %11 : vector<8x128xf32>
    %16 = arith.mulf %12, %12 : vector<8x128xf32>
    %17 = arith.mulf %13, %13 : vector<8x128xf32>
    %18 = arith.addf %16, %17 : vector<8x128xf32>
    %19 = arith.mulf %14, %14 : vector<8x128xf32>
    %20 = arith.addf %18, %19 : vector<8x128xf32>
    %21 = arith.mulf %15, %15 : vector<8x128xf32>
    %22 = arith.addf %20, %21 : vector<8x128xf32>
    %23 = arith.addf %4, %5 : vector<8x128xf32>
    %24 = arith.addf %6, %7 : vector<8x128xf32>
    %25 = arith.subf %5, %4 : vector<8x128xf32>
    %26 = arith.subf %7, %6 : vector<8x128xf32>
    %27 = arith.addf %23, %24 : vector<8x128xf32>
    %28 = arith.subf %24, %23 : vector<8x128xf32>
    %29 = arith.addf %25, %26 : vector<8x128xf32>
    %30 = arith.subf %26, %25 : vector<8x128xf32>
    %31 = arith.addf %8, %9 : vector<8x128xf32>
    %32 = arith.addf %10, %11 : vector<8x128xf32>
    %33 = arith.subf %9, %8 : vector<8x128xf32>
    %34 = arith.subf %11, %10 : vector<8x128xf32>
    %35 = arith.addf %31, %32 : vector<8x128xf32>
    %36 = arith.subf %32, %31 : vector<8x128xf32>
    %37 = arith.addf %33, %34 : vector<8x128xf32>
    %38 = arith.subf %34, %33 : vector<8x128xf32>
    %39 = arith.subf %27, %35 : vector<8x128xf32>
    %40 = arith.subf %28, %36 : vector<8x128xf32>
    %41 = arith.subf %29, %37 : vector<8x128xf32>
    %42 = arith.subf %30, %38 : vector<8x128xf32>
    %43 = arith.mulf %36, %36 : vector<8x128xf32>
    %cst = arith.constant 1.200000e+00 : f32
    %44 = vector.broadcast %cst : f32 to vector<8x128xf32>
    %45 = arith.mulf %44, %43 : vector<8x128xf32>
    %46 = arith.mulf %28, %28 : vector<8x128xf32>
    %47 = arith.subf %45, %46 : vector<8x128xf32>
    %cst_18 = arith.constant 0.000000e+00 : f32
    %48 = vector.broadcast %cst_18 : f32 to vector<8x128xf32>
    %49 = arith.maximumf %47, %48 : vector<8x128xf32>
    %50 = arith.mulf %37, %37 : vector<8x128xf32>
    %cst_19 = arith.constant 1.200000e+00 : f32
    %51 = vector.broadcast %cst_19 : f32 to vector<8x128xf32>
    %52 = arith.mulf %51, %50 : vector<8x128xf32>
    %53 = arith.mulf %29, %29 : vector<8x128xf32>
    %54 = arith.subf %52, %53 : vector<8x128xf32>
    %cst_20 = arith.constant 0.000000e+00 : f32
    %55 = vector.broadcast %cst_20 : f32 to vector<8x128xf32>
    %56 = arith.maximumf %54, %55 : vector<8x128xf32>
    %57 = arith.mulf %38, %38 : vector<8x128xf32>
    %cst_21 = arith.constant 1.200000e+00 : f32
    %58 = vector.broadcast %cst_21 : f32 to vector<8x128xf32>
    %59 = arith.mulf %58, %57 : vector<8x128xf32>
    %60 = arith.mulf %30, %30 : vector<8x128xf32>
    %61 = arith.subf %59, %60 : vector<8x128xf32>
    %cst_22 = arith.constant 0.000000e+00 : f32
    %62 = vector.broadcast %cst_22 : f32 to vector<8x128xf32>
    %63 = arith.maximumf %61, %62 : vector<8x128xf32>
    %64 = arith.mulf %39, %39 : vector<8x128xf32>
    %65 = arith.mulf %40, %40 : vector<8x128xf32>
    %66 = arith.mulf %41, %41 : vector<8x128xf32>
    %67 = arith.addf %65, %66 : vector<8x128xf32>
    %68 = arith.addf %67, %49 : vector<8x128xf32>
    %69 = arith.addf %68, %56 : vector<8x128xf32>
    %70 = arith.mulf %42, %42 : vector<8x128xf32>
    %cst_23 = arith.constant 1.95312503E-4 : f32
    %71 = vector.broadcast %cst_23 : f32 to vector<8x128xf32>
    %72 = arith.mulf %71, %22 : vector<8x128xf32>
    %cst_24 = arith.constant 1.95312496E-5 : f32
    %73 = vector.broadcast %cst_24 : f32 to vector<8x128xf32>
    %74 = arith.mulf %73, %64 : vector<8x128xf32>
    %75 = arith.addf %72, %74 : vector<8x128xf32>
    %cst_25 = arith.constant 7.32421875E-4 : f32
    %76 = vector.broadcast %cst_25 : f32 to vector<8x128xf32>
    %77 = arith.mulf %76, %69 : vector<8x128xf32>
    %78 = arith.addf %75, %77 : vector<8x128xf32>
    %cst_26 = arith.constant 0.00193359377 : f32
    %79 = vector.broadcast %cst_26 : f32 to vector<8x128xf32>
    %80 = arith.mulf %79, %70 : vector<8x128xf32>
    %81 = arith.addf %78, %80 : vector<8x128xf32>
    %cst_27 = arith.constant 0.001953125 : f32
    %82 = vector.broadcast %cst_27 : f32 to vector<8x128xf32>
    %83 = arith.mulf %82, %63 : vector<8x128xf32>
    %84 = arith.addf %81, %83 : vector<8x128xf32>
    %85 = arith.addf %3, %84 : vector<8x128xf32>
    %c0_28 = arith.constant 0 : index
    %c0_29 = arith.constant 0 : index
    %86 = vector.load %arg10[%c0_28, %c0_29] : memref<8x128xf32, #tpu.memory_space<vmem>>, vector<8x128xf32>
    tpu.vector_store %arg10[%c0_28, %c0_29], %85 {strides = array<i32>} : memref<8x128xf32, #tpu.memory_space<vmem>>, vector<8x128xf32>,
    return
  }
  func.func @transform_0(%arg0: i32, %arg1: i32) -> (i32, i32) {
    %c1_i32 = arith.constant 1 : i32
    %0 = arith.muli %arg0, %c1_i32 : i32
    %1 = arith.addi %0, %arg1 : i32
    %c0_i32 = arith.constant 0 : i32
    %c0_i32_0 = arith.constant 0 : i32
    return %1, %c0_i32 : i32, i32
  }
  func.func @transform_1(%arg0: i32, %arg1: i32) -> (i32, i32) {
    %c1_i32 = arith.constant 1 : i32
    %0 = arith.muli %arg0, %c1_i32 : i32
    %1 = arith.addi %0, %arg1 : i32
    %c0_i32 = arith.constant 0 : i32
    %c0_i32_0 = arith.constant 0 : i32
    return %1, %c0_i32 : i32, i32
  }
  func.func @transform_2(%arg0: i32, %arg1: i32) -> (i32, i32) {
    %c1_i32 = arith.constant 1 : i32
    %0 = arith.muli %arg0, %c1_i32 : i32
    %1 = arith.addi %0, %arg1 : i32
    %c0_i32 = arith.constant 0 : i32
    %c0_i32_0 = arith.constant 0 : i32
    return %1, %c0_i32 : i32, i32
  }
  func.func @transform_3(%arg0: i32, %arg1: i32) -> (i32, i32) {
    %c1_i32 = arith.constant 1 : i32
    %0 = arith.muli %arg0, %c1_i32 : i32
    %1 = arith.addi %0, %arg1 : i32
    %c0_i32 = arith.constant 0 : i32
    %c0_i32_0 = arith.constant 0 : i32
    return %1, %c0_i32 : i32, i32
  }
  func.func @transform_4(%arg0: i32, %arg1: i32) -> (i32, i32) {
    %c1_i32 = arith.constant 1 : i32
    %0 = arith.muli %arg0, %c1_i32 : i32
    %1 = arith.addi %0, %arg1 : i32
    %c0_i32 = arith.constant 0 : i32
    %c0_i32_0 = arith.constant 0 : i32
    return %1, %c0_i32 : i32, i32
  }
  func.func @transform_5(%arg0: i32, %arg1: i32) -> (i32, i32) {
    %c1_i32 = arith.constant 1 : i32
    %0 = arith.muli %arg0, %c1_i32 : i32
    %1 = arith.addi %0, %arg1 : i32
    %c0_i32 = arith.constant 0 : i32
    %c0_i32_0 = arith.constant 0 : i32
    return %1, %c0_i32 : i32, i32
  }
  func.func @transform_6(%arg0: i32, %arg1: i32) -> (i32, i32) {
    %c1_i32 = arith.constant 1 : i32
    %0 = arith.muli %arg0, %c1_i32 : i32
    %1 = arith.addi %0, %arg1 : i32
    %c0_i32 = arith.constant 0 : i32
    %c0_i32_0 = arith.constant 0 : i32
    return %1, %c0_i32 : i32, i32
  }
  func.func @transform_7(%arg0: i32, %arg1: i32) -> (i32, i32) {
    %c1_i32 = arith.constant 1 : i32
    %0 = arith.muli %arg0, %c1_i32 : i32
    %1 = arith.addi %0, %arg1 : i32
    %c0_i32 = arith.constant 0 : i32
    %c0_i32_0 = arith.constant 0 : i32
    return %1, %c0_i32 : i32, i32
  }
  func.func @transform_8(%arg0: i32, %arg1: i32) -> (i32, i32) {
    %c0_i32 = arith.constant 0 : i32
    %c0_i32_0 = arith.constant 0 : i32
    return %arg0, %c0_i32 : i32, i32
  }
}

</mosaic_0001>

<llo_original>
// kernel: tpu_custom_call.1
$region0: #{tpu_custom_call.1}
  #allocation0 [shape = 'u32[]', space=smem, size = 0x4, offset = 0x4, fixed_abs, tag = 'smem constant byte address 0x4 - core index']
  #allocation1 [shape = 'u32[72,128]{1,0:T(1,128)}', space=vmem, size = 0x9000, scoped, tag = 'internal scratch']
  %s0 = inlined_call_operand.hbm [shape: f32[8,128], index: 0, kind: input, shape index: {}]
  %s1 = inlined_call_operand.hbm [shape: f32[8,128], index: 1, kind: input, shape index: {}]
  %s2 = inlined_call_operand.hbm [shape: f32[8,128], index: 2, kind: input, shape index: {}]
  %s3 = inlined_call_operand.hbm [shape: f32[8,128], index: 3, kind: input, shape index: {}]
  %s4 = inlined_call_operand.hbm [shape: f32[8,128], index: 4, kind: input, shape index: {}]
  %s5 = inlined_call_operand.hbm [shape: f32[8,128], index: 5, kind: input, shape index: {}]
  %s6 = inlined_call_operand.hbm [shape: f32[8,128], index: 6, kind: input, shape index: {}]
  %s7 = inlined_call_operand.hbm [shape: f32[8,128], index: 7, kind: input, shape index: {}]
  %s8 = inlined_call_operand.hbm [shape: f32[8,128], index: 8, kind: output, shape index: {}]
  %s9 = sld [smem:[#allocation0]]
  $region78: #{tpu_custom_call.1} parent=0
    _
  %s11 = ssub.s32 1, %s9
  %s12 = scalar_select 0, %s11, %s9
  $region1: #{tpu_custom_call.1} parent=0
    #allocation2 [shape = 'u8[4096]{0}', space=vmem, size = 0x1000, scoped, tag = 'input window, operand 0, single buffered']
    #allocation3 [shape = 's32[1]{0}', space=sflag, size = 0x4, scoped, tag = 'scoped memory for tpu_custom_call.1']
    #allocation4 [shape = 's32[1]{0}', space=sflag, size = 0x4, scoped, tag = 'scoped memory for tpu_custom_call.1']
    #allocation5 [shape = 'u8[4096]{0}', space=vmem, size = 0x1000, scoped, tag = 'input window, operand 1, single buffered']
    #allocation6 [shape = 's32[1]{0}', space=sflag, size = 0x4, scoped, tag = 'scoped memory for tpu_custom_call.1']
    #allocation7 [shape = 'u8[4096]{0}', space=vmem, size = 0x1000, scoped, tag = 'input window, operand 2, single buffered']
    #allocation8 [shape = 'u8[4096]{0}', space=vmem, size = 0x1000, scoped, tag = 'input window, operand 3, single buffered']
    #allocation9 [shape = 's32[1]{0}', space=sflag, size = 0x4, scoped, tag = 'scoped memory for tpu_custom_call.1']
    #allocation10 [shape = 'u8[4096]{0}', space=vmem, size = 0x1000, scoped, tag = 'input window, operand 4, single buffered']
    #allocation11 [shape = 'u8[4096]{0}', space=vmem, size = 0x1000, scoped, tag = 'input window, operand 5, single buffered']
    #allocation12 [shape = 's32[1]{0}', space=sflag, size = 0x4, scoped, tag = 'scoped memory for tpu_custom_call.1']
    #allocation13 [shape = 'u8[4096]{0}', space=vmem, size = 0x1000, scoped, tag = 'input window, operand 6, single buffered']
    #allocation14 [shape = 'u8[4096]{0}', space=vmem, size = 0x1000, scoped, tag = 'input window, operand 7, single buffered']
    #allocation15 [shape = 's32[1]{0}', space=sflag, size = 0x4, scoped, tag = 'scoped memory for tpu_custom_call.1']
    #allocation16 [shape = 'u8[4096]{0}', space=vmem, size = 0x1000, scoped, tag = 'output window, operand 0, single buffered']
    %13 = vsyncpa [#allocation3], 0
    %14 = vsyncpa [#allocation6], 0
    %15 = vsyncpa [#allocation9], 0
    %16 = vsyncpa [#allocation12], 0
    %17 = vsyncpa [#allocation15], 0
    %18 = vsyncpa [#allocation4], 0
    // Predicated region
    $region2: #{tpu_custom_call.1} parent=1 // pred_check
      _
    $region3: #{tpu_custom_call.1} parent=1 // pred_check_branch
      %20 = sbr.rel (0) target = $region5
    $region4: #{tpu_custom_call.1} parent=1 // pred_region
      %s21 = sadd.s32 0, 0
      %23 = vsyncadd [#allocation3], 0
      %s24 = smul.addr %s21, 8
      %s25 = scalar_lea.hbm %s0, %s24
      %s27 = sshll.u32 %s25, 4
      %s28 = int_to_ptr.hbm [resolvable:$true] %s27
      %s29 = sshll.u32 [#allocation2], 4
      %s30 = int_to_ptr.vmem [resolvable:$true] %s29
      %32 = dma.hbm_to_vmem [thread:$0]  %s28, 128, %s30, [#allocation3]
    $region5: #{tpu_custom_call.1} parent=1 // pred_fallthru
      _
    // Predicated region
    $region6: #{tpu_custom_call.1} parent=1 // pred_check
      _
    $region7: #{tpu_custom_call.1} parent=1 // pred_check_branch
      %34 = sbr.rel (0) target = $region9
    $region8: #{tpu_custom_call.1} parent=1 // pred_region
      %s35 = sadd.s32 0, 0
      %37 = vsyncadd [#allocation6], 0
      %s38 = smul.addr %s35, 8
      %s39 = scalar_lea.hbm %s1, %s38
      %s41 = sshll.u32 %s39, 4
      %s42 = int_to_ptr.hbm [resolvable:$true] %s41
      %s43 = sshll.u32 [#allocation5], 4
      %s44 = int_to_ptr.vmem [resolvable:$true] %s43
      %46 = dma.hbm_to_vmem [thread:$0]  %s42, 128, %s44, [#allocation6]
    $region9: #{tpu_custom_call.1} parent=1 // pred_fallthru
      _
    // Predicated region
    $region10: #{tpu_custom_call.1} parent=1 // pred_check
      _
    $region11: #{tpu_custom_call.1} parent=1 // pred_check_branch
      %48 = sbr.rel (0) target = $region13
    $region12: #{tpu_custom_call.1} parent=1 // pred_region
      %s49 = sadd.s32 0, 0
      %51 = vsyncadd [#allocation6], 0
      %s52 = smul.addr %s49, 8
      %s53 = scalar_lea.hbm %s2, %s52
      %s55 = sshll.u32 %s53, 4
      %s56 = int_to_ptr.hbm [resolvable:$true] %s55
      %s57 = sshll.u32 [#allocation7], 4
      %s58 = int_to_ptr.vmem [resolvable:$true] %s57
      %60 = dma.hbm_to_vmem [thread:$0]  %s56, 128, %s58, [#allocation6]
    $region13: #{tpu_custom_call.1} parent=1 // pred_fallthru
      _
    // Predicated region
    $region14: #{tpu_custom_call.1} parent=1 // pred_check
      _
    $region15: #{tpu_custom_call.1} parent=1 // pred_check_branch
      %62 = sbr.rel (0) target = $region17
    $region16: #{tpu_custom_call.1} parent=1 // pred_region
      %s63 = sadd.s32 0, 0
      %65 = vsyncadd [#allocation9], 0
      %s66 = smul.addr %s63, 8
      %s67 = scalar_lea.hbm %s3, %s66
      %s69 = sshll.u32 %s67, 4
      %s70 = int_to_ptr.hbm [resolvable:$true] %s69
      %s71 = sshll.u32 [#allocation8], 4
      %s72 = int_to_ptr.vmem [resolvable:$true] %s71
      %74 = dma.hbm_to_vmem [thread:$0]  %s70, 128, %s72, [#allocation9]
    $region17: #{tpu_custom_call.1} parent=1 // pred_fallthru
      _
    // Predicated region
    $region18: #{tpu_custom_call.1} parent=1 // pred_check
      _
    $region19: #{tpu_custom_call.1} parent=1 // pred_check_branch
      %76 = sbr.rel (0) target = $region21
    $region20: #{tpu_custom_call.1} parent=1 // pred_region
      %s77 = sadd.s32 0, 0
      %79 = vsyncadd [#allocation9], 0
      %s80 = smul.addr %s77, 8
      %s81 = scalar_lea.hbm %s4, %s80
      %s83 = sshll.u32 %s81, 4
      %s84 = int_to_ptr.hbm [resolvable:$true] %s83
      %s85 = sshll.u32 [#allocation10], 4
      %s86 = int_to_ptr.vmem [resolvable:$true] %s85
      %88 = dma.hbm_to_vmem [thread:$0]  %s84, 128, %s86, [#allocation9]
    $region21: #{tpu_custom_call.1} parent=1 // pred_fallthru
      _
    // Predicated region
    $region22: #{tpu_custom_call.1} parent=1 // pred_check
      _
    $region23: #{tpu_custom_call.1} parent=1 // pred_check_branch
      %90 = sbr.rel (0) target = $region25
    $region24: #{tpu_custom_call.1} parent=1 // pred_region
      %s91 = sadd.s32 0, 0
      %93 = vsyncadd [#allocation12], 0
      %s94 = smul.addr %s91, 8
      %s95 = scalar_lea.hbm %s5, %s94
      %s97 = sshll.u32 %s95, 4
      %s98 = int_to_ptr.hbm [resolvable:$true] %s97
      %s99 = sshll.u32 [#allocation11], 4
      %s100 = int_to_ptr.vmem [resolvable:$true] %s99
      %102 = dma.hbm_to_vmem [thread:$0]  %s98, 128, %s100, [#allocation12]
    $region25: #{tpu_custom_call.1} parent=1 // pred_fallthru
      _
    // Predicated region
    $region26: #{tpu_custom_call.1} parent=1 // pred_check
      _
    $region27: #{tpu_custom_call.1} parent=1 // pred_check_branch
      %104 = sbr.rel (0) target = $region29
    $region28: #{tpu_custom_call.1} parent=1 // pred_region
      %s105 = sadd.s32 0, 0
      %107 = vsyncadd [#allocation12], 0
      %s108 = smul.addr %s105, 8
      %s109 = scalar_lea.hbm %s6, %s108
      %s111 = sshll.u32 %s109, 4
      %s112 = int_to_ptr.hbm [resolvable:$true] %s111
      %s113 = sshll.u32 [#allocation13], 4
      %s114 = int_to_ptr.vmem [resolvable:$true] %s113
      %116 = dma.hbm_to_vmem [thread:$0]  %s112, 128, %s114, [#allocation12]
    $region29: #{tpu_custom_call.1} parent=1 // pred_fallthru
      _
    // Predicated region
    $region30: #{tpu_custom_call.1} parent=1 // pred_check
      _
    $region31: #{tpu_custom_call.1} parent=1 // pred_check_branch
      %118 = sbr.rel (0) target = $region33
    $region32: #{tpu_custom_call.1} parent=1 // pred_region
      %s119 = sadd.s32 0, 0
      %121 = vsyncadd [#allocation15], 0
      %s122 = smul.addr %s119, 8
      %s123 = scalar_lea.hbm %s7, %s122
      %s125 = sshll.u32 %s123, 4
      %s126 = int_to_ptr.hbm [resolvable:$true] %s125
      %s127 = sshll.u32 [#allocation14], 4
      %s128 = int_to_ptr.vmem [resolvable:$true] %s127
      %130 = dma.hbm_to_vmem [thread:$0]  %s126, 128, %s128, [#allocation15]
    $region33: #{tpu_custom_call.1} parent=1 // pred_fallthru
      _
    // Predicated region
    $region34: #{tpu_custom_call.1} parent=1 // pred_check
      _
    $region35: #{tpu_custom_call.1} parent=1 // pred_check_branch
      %132 = sbr.rel (0) target = $region37
    $region36: #{tpu_custom_call.1} parent=1 // pred_region
      %134 = dma.done [#allocation3], 128
    $region37: #{tpu_custom_call.1} parent=1 // pred_fallthru
      _
    // Predicated region
    $region38: #{tpu_custom_call.1} parent=1 // pred_check
      _
    $region39: #{tpu_custom_call.1} parent=1 // pred_check_branch
      %136 = sbr.rel (0) target = $region41
    $region40: #{tpu_custom_call.1} parent=1 // pred_region
      %138 = dma.done [#allocation6], 128
    $region41: #{tpu_custom_call.1} parent=1 // pred_fallthru
      _
    // Predicated region
    $region42: #{tpu_custom_call.1} parent=1 // pred_check
      _
    $region43: #{tpu_custom_call.1} parent=1 // pred_check_branch
      %140 = sbr.rel (0) target = $region45
    $region44: #{tpu_custom_call.1} parent=1 // pred_region
      %142 = dma.done [#allocation6], 128
    $region45: #{tpu_custom_call.1} parent=1 // pred_fallthru
      _
    // Predicated region
    $region46: #{tpu_custom_call.1} parent=1 // pred_check
      _
    $region47: #{tpu_custom_call.1} parent=1 // pred_check_branch
      %144 = sbr.rel (0) target = $region49
    $region48: #{tpu_custom_call.1} parent=1 // pred_region
      %146 = dma.done [#allocation9], 128
    $region49: #{tpu_custom_call.1} parent=1 // pred_fallthru
      _
    // Predicated region
    $region50: #{tpu_custom_call.1} parent=1 // pred_check
      _
    $region51: #{tpu_custom_call.1} parent=1 // pred_check_branch
      %148 = sbr.rel (0) target = $region53
    $region52: #{tpu_custom_call.1} parent=1 // pred_region
      %150 = dma.done [#allocation9], 128
    $region53: #{tpu_custom_call.1} parent=1 // pred_fallthru
      _
    // Predicated region
    $region54: #{tpu_custom_call.1} parent=1 // pred_check
      _
    $region55: #{tpu_custom_call.1} parent=1 // pred_check_branch
      %152 = sbr.rel (0) target = $region57
    $region56: #{tpu_custom_call.1} parent=1 // pred_region
      %154 = dma.done [#allocation12], 128
    $region57: #{tpu_custom_call.1} parent=1 // pred_fallthru
      _
    // Predicated region
    $region58: #{tpu_custom_call.1} parent=1 // pred_check
      _
    $region59: #{tpu_custom_call.1} parent=1 // pred_check_branch
      %156 = sbr.rel (0) target = $region61
    $region60: #{tpu_custom_call.1} parent=1 // pred_region
      %158 = dma.done [#allocation12], 128
    $region61: #{tpu_custom_call.1} parent=1 // pred_fallthru
      _
    // Predicated region
    $region62: #{tpu_custom_call.1} parent=1 // pred_check
      _
    $region63: #{tpu_custom_call.1} parent=1 // pred_check_branch
      %160 = sbr.rel (0) target = $region65
    $region64: #{tpu_custom_call.1} parent=1 // pred_region
      %162 = dma.done [#allocation15], 128
    $region65: #{tpu_custom_call.1} parent=1 // pred_fallthru
      _
    %s163 = sadd.s32 0, 0
    %s164 = sadd.s32 0, 0
    %s165 = sadd.s32 0, 0
    %s166 = sadd.s32 0, 0
    %s167 = sadd.s32 0, 0
    %s168 = sadd.s32 0, 0
    %s169 = sadd.s32 0, 0
    %s170 = sadd.s32 0, 0
    %p171 = scmp.eq.s32.totalorder 0, 0
    // Predicated region
    $region66: #{tpu_custom_call.1} parent=1 // pred_check
      %p172 = pneg %p171
    $region67: #{tpu_custom_call.1} parent=1 // pred_check_branch
      %174 = sbr.rel (%p172) target = $region69
    $region68: #{tpu_custom_call.1} parent=1 // pred_region
      %175 = vst [vmem:[#allocation16] sm:$0xff] 0.0
    $region69: #{tpu_custom_call.1} parent=1 // pred_fallthru
      _
    %v176 = vld [vmem:[#allocation16] sm:$0xff]
    %v177 = vld [vmem:[#allocation2] sm:$0xff]
    %v178 = vld [vmem:[#allocation5] sm:$0xff]
    %v179 = vld [vmem:[#allocation7] sm:$0xff]
    %v180 = vld [vmem:[#allocation8] sm:$0xff]
    %v181 = vld [vmem:[#allocation10] sm:$0xff]
    %v182 = vld [vmem:[#allocation11] sm:$0xff]
    %v183 = vld [vmem:[#allocation13] sm:$0xff]
    %v184 = vld [vmem:[#allocation14] sm:$0xff]
    %v185 = vsub.f32 %v177, %v181
    %v186 = vsub.f32 %v178, %v182
    %v187 = vsub.f32 %v179, %v183
    %v188 = vsub.f32 %v180, %v184
    %v189 = vmul.f32 %v185, %v185
    %v190 = vmul.f32 %v186, %v186
    %v191 = vadd.f32 %v189, %v190
    %v192 = vmul.f32 %v187, %v187
    %v193 = vadd.f32 %v191, %v192
    %v194 = vmul.f32 %v188, %v188
    %v195 = vadd.f32 %v193, %v194
    %v196 = vadd.f32 %v177, %v178
    %v197 = vadd.f32 %v179, %v180
    %v198 = vsub.f32 %v178, %v177
    %v199 = vsub.f32 %v180, %v179
    %v200 = vadd.f32 %v196, %v197
    %v201 = vsub.f32 %v197, %v196
    %v202 = vadd.f32 %v198, %v199
    %v203 = vsub.f32 %v199, %v198
    %v204 = vadd.f32 %v181, %v182
    %v205 = vadd.f32 %v183, %v184
    %v206 = vsub.f32 %v182, %v181
    %v207 = vsub.f32 %v184, %v183
    %v208 = vadd.f32 %v204, %v205
    %v209 = vsub.f32 %v205, %v204
    %v210 = vadd.f32 %v206, %v207
    %v211 = vsub.f32 %v207, %v206
    %v212 = vsub.f32 %v200, %v208
    %v213 = vsub.f32 %v201, %v209
    %v214 = vsub.f32 %v202, %v210
    %v215 = vsub.f32 %v203, %v211
    %v216 = vmul.f32 %v209, %v209
    %v217 = vmul.f32 %v216, 1.2
    %v218 = vmul.f32 %v201, %v201
    %v219 = vsub.f32 %v217, %v218
    %v220 = vmax.f32 %v219, 0.0
    %v221 = vmul.f32 %v210, %v210
    %v222 = vmul.f32 %v221, 1.2
    %v223 = vmul.f32 %v202, %v202
    %v224 = vsub.f32 %v222, %v223
    %v225 = vmax.f32 %v224, 0.0
    %v226 = vmul.f32 %v211, %v211
    %v227 = vmul.f32 %v226, 1.2
    %v228 = vmul.f32 %v203, %v203
    %v229 = vsub.f32 %v227, %v228
    %v230 = vmax.f32 %v229, 0.0
    %v231 = vmul.f32 %v212, %v212
    %v232 = vmul.f32 %v213, %v213
    %v233 = vmul.f32 %v214, %v214
    %v234 = vadd.f32 %v232, %v233
    %v235 = vadd.f32 %v234, %v220
    %v236 = vadd.f32 %v235, %v225
    %v237 = vmul.f32 %v215, %v215
    %v238 = vmul.f32 %v195, 0.0001953125
    %v239 = vmul.f32 %v231, 1.953125e-05
    %v240 = vadd.f32 %v238, %v239
    %v241 = vmul.f32 %v236, 0.0007324219
    %v242 = vadd.f32 %v240, %v241
    %v243 = vmul.f32 %v237, 0.0019335938
    %v244 = vadd.f32 %v242, %v243
    %v245 = vmul.f32 %v230, 0.001953125
    %v246 = vadd.f32 %v244, %v245
    %v247 = vadd.f32 %v176, %v246
    %248 = vst [vmem:[#allocation16] sm:$0xff] %v247
    // Predicated region
    $region70: #{tpu_custom_call.1} parent=1 // pred_check
      _
    $region71: #{tpu_custom_call.1} parent=1 // pred_check_branch
      %250 = sbr.rel (0) target = $region73
    $region72: #{tpu_custom_call.1} parent=1 // pred_region
      %252 = vsyncadd [#allocation4], 0
      %s254 = sshll.u32 [#allocation16], 4
      %s255 = int_to_ptr.vmem [resolvable:$true] %s254
      %s256 = sshll.u32 %s8, 4
      %s257 = int_to_ptr.hbm [resolvable:$true] %s256
      %259 = dma.vmem_to_hbm [thread:$0]  %s255, 128, %s257, [#allocation4]
    $region73: #{tpu_custom_call.1} parent=1 // pred_fallthru
      _
    // Predicated region
    $region74: #{tpu_custom_call.1} parent=1 // pred_check
      _
    $region75: #{tpu_custom_call.1} parent=1 // pred_check_branch
      %261 = sbr.rel (0) target = $region77
    $region76: #{tpu_custom_call.1} parent=1 // pred_region
      %263 = dma.done [#allocation4], 128
    $region77: #{tpu_custom_call.1} parent=1 // pred_fallthru
      _
    %264 = vsyncpa [#allocation3], 1
    %265 = vsyncpa [#allocation6], 1
    %266 = vsyncpa [#allocation9], 1
    %267 = vsyncpa [#allocation12], 1
    %268 = vsyncpa [#allocation15], 1
    %269 = vsyncpa [#allocation4], 1

</llo_original>
